<compile_context>
chip_gen: v6e
topology: v6e:2x2x1
jax: 0.10.0
libtpu: 0.0.40
codegen_flags: <defaults>
</compile_context>

<pallas_src>
import numpy as np
import jax
import jax.numpy as jnp
from jax.experimental import pallas as pl
from jax.experimental.pallas import tpu as pltpu

LANE = 128     # TPU lane width (last-dim tile)
SUBLANE = 8    # f32 sublane width (second-to-last-dim tile)


def _round_up(x, m):
    return (x + m - 1) // m * m


# ----------------------------------------------------------------------------
# Pallas kernel: fused 3-layer MLP (matmul + bias + relu per layer).
# Masks already folded into weights/biases -> body is 3 MXU matmuls + cheap
# f32 epilogues. Weights arrive pre-transposed as (in, out); biases are
# (1, out) row vectors broadcasting over the batch tile.
# ----------------------------------------------------------------------------
def adaptive_net_kernel(x_ref, w0_ref, b0_ref, w1_ref, b1_ref, w2_ref, b2_ref,
                        out_ref):
    compute_dtype = w0_ref.dtype  # bf16 MXU operands on every generation

    x = x_ref[...].astype(compute_dtype)

    # Layer 0: input -> hidden, bias, ReLU (f32 accumulate, f32 epilogue)
    h1 = jnp.dot(x, w0_ref[...], preferred_element_type=jnp.float32) + b0_ref[...]
    h1 = jnp.maximum(h1, 0.0)

    # Layer 1: hidden -> hidden//2, bias, ReLU
    h2 = jnp.dot(h1.astype(compute_dtype), w1_ref[...],
                 preferred_element_type=jnp.float32) + b1_ref[...]
    h2 = jnp.maximum(h2, 0.0)

    # Layer 2: hidden//2 -> output, linear
    out = jnp.dot(h2.astype(compute_dtype), w2_ref[...],
                  preferred_element_type=jnp.float32) + b2_ref[...]
    out_ref[...] = out.astype(out_ref.dtype)


# ----------------------------------------------------------------------------
# One-time parameter preparation: fold masks, transpose, pad hidden dims, cast.
# Input (K of layer 0) and output (N of layer 2) dims stay UNPADDED so the
# x / out HBM traffic is exactly the useful bytes.
# ----------------------------------------------------------------------------
def prepare_params(params, use_bf16=True):
    (w0, b0, w1, b1, w2, b2, m1, m2, m3) = params

    # Mask folding relu(z)*m == relu(z*m) is exact only for binary masks.
    for m in (m1, m2, m3):
        mv = np.asarray(m)
        assert np.all((mv == 0) | (mv == 1)), "neuron masks must be binary {0,1}"

    w0f = w0.T * m1[None, :]
    b0f = b0 * m1
    w1f = w1.T * m2[None, :]
    b1f = b1 * m2
    w2f = w2.T * m3[None, :]
    b2f = b2 * m3

    in_size, h_size = w0f.shape
    h2_size = w1f.shape[1]
    out_size = w2f.shape[1]

    h_p = _round_up(h_size, LANE)
    h2_p = _round_up(h2_size, LANE)

    def pad2(a, rows, cols):
        return jnp.pad(a, ((0, rows - a.shape[0]), (0, cols - a.shape[1])))

    def pad_row(a, cols):
        return jnp.pad(a, (0, cols - a.shape[0]))[None, :]

    w_dtype = jnp.bfloat16 if use_bf16 else jnp.float32

    kernel_params = (
        pad2(w0f, in_size, h_p).astype(w_dtype),     # (in_size, h_p)  K unpadded
        pad_row(b0f, h_p).astype(jnp.float32),       # (1, h_p)
        pad2(w1f, h_p, h2_p).astype(w_dtype),        # (h_p, h2_p)
        pad_row(b1f, h2_p).astype(jnp.float32),      # (1, h2_p)
        pad2(w2f, h2_p, out_size).astype(w_dtype),   # (h2_p, out_size) N unpadded
        pad_row(b2f, out_size).astype(jnp.float32),  # (1, out_size)
    )
    dims = dict(in_size=in_size, h_size=h_size, h2_size=h2_size,
                out_size=out_size, h_p=h_p, h2_p=h2_p)
    return kernel_params, dims


def _vmem_ceiling_bytes(default_cap=64 * 2**20):
    # ~80% of physical VMEM: ≈51 MiB on v7x (64 MiB/TC), ≈102 MiB on v5e/v6e.
    try:
        cap = int(getattr(pltpu.get_tpu_info(), "vmem_capacity_bytes",
                          default_cap))
    except Exception:
        cap = default_cap
    return int(cap * 0.8)


def _pick_batch_tile(batch, tb):
    tb_eff = min(tb, _round_up(batch, SUBLANE))
    # Shrink the tile while batch-padding waste would exceed ~12.5% of batch.
    while tb_eff > SUBLANE and (_round_up(batch, tb_eff) - batch) * 8 > batch:
        tb_eff = _round_up(max(SUBLANE, tb_eff // 2), SUBLANE)
    # Prefer >=2 grid steps so ("parallel",) can span both v7x TensorCores.
    if tb_eff > SUBLANE and _round_up(batch, tb_eff) // tb_eff < 2:
        tb_eff = _round_up(max(SUBLANE, tb_eff // 2), SUBLANE)
    return tb_eff


# ----------------------------------------------------------------------------
# Forward wrapper factory: returns a jitted forward(x) closure.
# ----------------------------------------------------------------------------
def make_forward(kernel_params, dims, tb=512, single_buffer_weights=True):
    w0p, b0p, w1p, b1p, w2p, b2p = kernel_params
    in_size, out_size = dims["in_size"], dims["out_size"]
    h_size, h2_size = dims["h_size"], dims["h2_size"]
    h_p, h2_p = dims["h_p"], dims["h2_p"]
    w_itemsize = w0p.dtype.itemsize
    vmem_ceiling = _vmem_ceiling_bytes()

    resident = lambda i: (0, 0)  # weights/biases: same block every grid step

    if single_buffer_weights:
        # Constant index_map -> one VMEM copy suffices; default double
        # buffering of never-changing operands only wastes resident VMEM.
        def wspec(shape):
            return pl.BlockSpec(shape, resident, pipeline_mode=pl.Buffered(1))
    else:
        def wspec(shape):
            return pl.BlockSpec(shape, resident)

    @jax.jit
    def forward(x):
        batch = x.shape[0]
        tb_eff = _pick_batch_tile(batch, tb)
        bp = _round_up(batch, tb_eff)

        # Only the batch dim is padded; feature dim stays in_size, dtype stays
        # f32 (the bf16 cast happens inside the kernel).
        xp = x if bp == batch else jnp.pad(x, ((0, bp - batch), (0, 0)))

        # Advisory cost estimate on REAL (unpadded) work.
        flops = 2 * batch * (in_size * h_size + h_size * h2_size
                             + h2_size * out_size)
        bytes_accessed = (
            batch * in_size * 4
            + (w0p.size + w1p.size + w2p.size) * w_itemsize
            + (b0p.size + b1p.size + b2p.size) * 4
            + batch * out_size * 4
        )

        wbuf = 1 if single_buffer_weights else 2
        vmem_need = (
            2 * tb_eff * in_size * 4            # double-buffered x tiles (f32)
            + 2 * tb_eff * out_size * 4         # double-buffered out tiles (f32)
            + wbuf * (w0p.size + w1p.size + w2p.size) * w_itemsize
            + wbuf * (b0p.size + b1p.size + b2p.size) * 4
            + tb_eff * (h_p + h2_p) * 6         # f32 intermediates + bf16 copies
        )
        vmem_limit = int(min(vmem_ceiling, max(4 * vmem_need, 16 * 2**20)))

        out_full = pl.pallas_call(
            adaptive_net_kernel,
            out_shape=jax.ShapeDtypeStruct((bp, out_size), jnp.float32),
            grid_spec=pltpu.PrefetchScalarGridSpec(
                num_scalar_prefetch=0,
                grid=(bp // tb_eff,),
                in_specs=[
                    pl.BlockSpec((tb_eff, in_size), lambda i: (i, 0)),
                    wspec((in_size, h_p)),
                    wspec((1, h_p)),
                    wspec((h_p, h2_p)),
                    wspec((1, h2_p)),
                    wspec((h2_p, out_size)),
                    wspec((1, out_size)),
                ],
                out_specs=pl.BlockSpec((tb_eff, out_size), lambda i: (i, 0)),
            ),
            compiler_params=pltpu.CompilerParams(
                dimension_semantics=("parallel",),  # batch sharded across TCs
                vmem_limit_bytes=vmem_limit,
            ),
            cost_estimate=pl.CostEstimate(
                flops=flops, transcendentals=0, bytes_accessed=bytes_accessed),
        )(xp, w0p, b0p, w1p, b1p, w2p, b2p)

        return out_full if bp == batch else out_full[:batch]

    return forward


# ----------------------------------------------------------------------------
# Deterministic parameter construction (mirrors AdaptiveNetwork.__init__)
# ----------------------------------------------------------------------------
def build_params(input_size, hidden_size, output_size, seed=0):
    rng = np.random.RandomState(seed)
    layer_sizes = [input_size, hidden_size, hidden_size // 2, output_size]

    # Layer 0 weights: structured +1/-1 difference patterns.
    w0 = np.zeros((layer_sizes[1], layer_sizes[0]), dtype=np.float32)
    n_patterns = min(hidden_size, input_size * (input_size - 1))
    for j in range(n_patterns):
        pattern = np.zeros(input_size, dtype=np.float32)
        idx1 = j % input_size
        idx2 = (j // input_size + 1) % input_size
        pattern[idx1] = 1.0
        pattern[idx2] = -1.0
        w0[j] = pattern
    if hidden_size > input_size * (input_size - 1):
        w0[input_size * (input_size - 1):] = (
            rng.randn(hidden_size - input_size * (input_size - 1), input_size)
            .astype(np.float32) * 0.1
        )
    b0 = np.ones(layer_sizes[1], dtype=np.float32) * 0.5

    # Layer 1 weights: small random + identity-like pairs on the diagonal.
    w1 = rng.randn(layer_sizes[2], layer_sizes[1]).astype(np.float32) * 0.1
    for j in range(min(layer_sizes[2], hidden_size // 2)):
        w1[j, j * 2:j * 2 + 2] = 1.0
    b1 = np.zeros(layer_sizes[2], dtype=np.float32)

    # Layer 2 weights: uniform averaging.
    w2 = np.ones((layer_sizes[3], layer_sizes[2]), dtype=np.float32) / layer_sizes[2]
    b2 = np.zeros(layer_sizes[3], dtype=np.float32) - 0.5

    # Active-neuron masks for layers 1..3 (all active at init).
    m1 = np.ones(layer_sizes[1], dtype=np.float32)
    m2 = np.ones(layer_sizes[2], dtype=np.float32)
    m3 = np.ones(layer_sizes[3], dtype=np.float32)

    return tuple(jnp.asarray(a) for a in (w0, b0, w1, b1, w2, b2, m1, m2, m3))


def reference_forward(x, params):
    (w0, b0, w1, b1, w2, b2, m1, m2, m3) = params
    h1 = jnp.maximum(x @ w0.T + b0, 0.0) * m1
    h2 = jnp.maximum(h1 @ w1.T + b1, 0.0) * m2
    return (h2 @ w2.T + b2) * m3


if __name__ == "__main__":
    batch, input_size, hidden_size, output_size = 2, 16, 32, 8

    key = jax.random.PRNGKey(0)
    x = jax.random.normal(key, (batch, input_size), dtype=jnp.float32)

    params = build_params(input_size, hidden_size, output_size, seed=0)
    kernel_params, dims = prepare_params(params, use_bf16=True)

    forward = make_forward(kernel_params, dims, tb=512,
                           single_buffer_weights=True)
    try:
        out = jax.block_until_ready(forward(x))
    except Exception:
        # Fallback: this jax build rejected pipeline_mode=pl.Buffered(1);
        # rebuild with default (double-buffered) weight specs, which were
        # verified to compile cleanly.
        forward = make_forward(kernel_params, dims, tb=512,
                               single_buffer_weights=False)
        out = jax.block_until_ready(forward(x))

    ref = reference_forward(x, params)

    assert out.shape == (batch, output_size)
    tol = 5e-2  # bf16 MXU operands vs f32 reference
    max_err = float(jnp.max(jnp.abs(out - ref)))
    assert jnp.allclose(out, ref, atol=tol, rtol=tol), (
        f"Pallas output mismatch, max abs err = {max_err}")

    print("KERNEL_OK")
</pallas_src>

<mosaic_0001>
module attributes {stable_mosaic.version = 11 : i64} {
  func.func @adaptive_net_kernel(%arg0: i32, %arg1: memref<8x16xf32, #tpu.memory_space<vmem>>, %arg2: memref<16x128xbf16, #tpu.memory_space<vmem>>, %arg3: memref<1x128xf32, #tpu.memory_space<vmem>>, %arg4: memref<128x128xbf16, #tpu.memory_space<vmem>>, %arg5: memref<1x128xf32, #tpu.memory_space<vmem>>, %arg6: memref<128x8xbf16, #tpu.memory_space<vmem>>, %arg7: memref<1x8xf32, #tpu.memory_space<vmem>>, %arg8: memref<8x8xf32, #tpu.memory_space<vmem>>) attributes {dimension_semantics = [#tpu.dimension_semantics<parallel>], iteration_bounds = array<i64: 1>, scalar_prefetch = 0 : i64, scratch_operands = 0 : i64, tpu.core_type = #tpu.core_type<tc>, window_params = [{transform_indices = @transform_0, window_bounds = array<i64: 8, 16>}, {pipeline_mode = #tpu.pipeline_mode<synchronous>, transform_indices = @transform_1, window_bounds = array<i64: 16, 128>}, {pipeline_mode = #tpu.pipeline_mode<synchronous>, transform_indices = @transform_2, window_bounds = array<i64: 1, 128>}, {pipeline_mode = #tpu.pipeline_mode<synchronous>, transform_indices = @transform_3, window_bounds = array<i64: 128, 128>}, {pipeline_mode = #tpu.pipeline_mode<synchronous>, transform_indices = @transform_4, window_bounds = array<i64: 1, 128>}, {pipeline_mode = #tpu.pipeline_mode<synchronous>, transform_indices = @transform_5, window_bounds = array<i64: 128, 8>}, {pipeline_mode = #tpu.pipeline_mode<synchronous>, transform_indices = @transform_6, window_bounds = array<i64: 1, 8>}, {transform_indices = @transform_7, window_bounds = array<i64: 8, 8>}]} {
    %c0 = arith.constant 0 : index
    %c0_0 = arith.constant 0 : index
    %0 = vector.load %arg1[%c0, %c0_0] : memref<8x16xf32, #tpu.memory_space<vmem>>, vector<8x16xf32>
    %1 = arith.truncf %0 : vector<8x16xf32> to vector<8x16xbf16>
    %c0_1 = arith.constant 0 : index
    %c0_2 = arith.constant 0 : index
    %2 = vector.load %arg2[%c0_1, %c0_2] : memref<16x128xbf16, #tpu.memory_space<vmem>>, vector<16x128xbf16>
    %cst = arith.constant dense<0.000000e+00> : vector<8x128xf32>
    %3 = tpu.matmul %1, %2, %cst {dimension_numbers = #tpu.dot_dimension_numbers<[1], [0], [0], [1], [0, 0, 1, 1], [], []>} : vector<8x16xbf16>, vector<16x128xbf16>, vector<8x128xf32> -> vector<8x128xf32>
    %c0_3 = arith.constant 0 : index
    %c0_4 = arith.constant 0 : index
    %4 = vector.load %arg3[%c0_3, %c0_4] : memref<1x128xf32, #tpu.memory_space<vmem>>, vector<1x128xf32>
    %5 = vector.broadcast %4 : vector<1x128xf32> to vector<8x128xf32>
    %6 = arith.addf %3, %5 : vector<8x128xf32>
    %cst_5 = arith.constant 0.000000e+00 : f32
    %7 = vector.broadcast %cst_5 : f32 to vector<8x128xf32>
    %8 = arith.maximumf %6, %7 : vector<8x128xf32>
    %9 = arith.truncf %8 : vector<8x128xf32> to vector<8x128xbf16>
    %c0_6 = arith.constant 0 : index
    %c0_7 = arith.constant 0 : index
    %10 = vector.load %arg4[%c0_6, %c0_7] : memref<128x128xbf16, #tpu.memory_space<vmem>>, vector<128x128xbf16>
    %cst_8 = arith.constant dense<0.000000e+00> : vector<8x128xf32>
    %11 = tpu.matmul %9, %10, %cst_8 {dimension_numbers = #tpu.dot_dimension_numbers<[1], [0], [0], [1], [0, 0, 1, 1], [], []>} : vector<8x128xbf16>, vector<128x128xbf16>, vector<8x128xf32> -> vector<8x128xf32>
    %c0_9 = arith.constant 0 : index
    %c0_10 = arith.constant 0 : index
    %12 = vector.load %arg5[%c0_9, %c0_10] : memref<1x128xf32, #tpu.memory_space<vmem>>, vector<1x128xf32>
    %13 = vector.broadcast %12 : vector<1x128xf32> to vector<8x128xf32>
    %14 = arith.addf %11, %13 : vector<8x128xf32>
    %cst_11 = arith.constant 0.000000e+00 : f32
    %15 = vector.broadcast %cst_11 : f32 to vector<8x128xf32>
    %16 = arith.maximumf %14, %15 : vector<8x128xf32>
    %17 = arith.truncf %16 : vector<8x128xf32> to vector<8x128xbf16>
    %c0_12 = arith.constant 0 : index
    %c0_13 = arith.constant 0 : index
    %18 = vector.load %arg6[%c0_12, %c0_13] : memref<128x8xbf16, #tpu.memory_space<vmem>>, vector<128x8xbf16>
    %cst_14 = arith.constant dense<0.000000e+00> : vector<8x8xf32>
    %19 = tpu.matmul %17, %18, %cst_14 {dimension_numbers = #tpu.dot_dimension_numbers<[1], [0], [0], [1], [0, 0, 1, 1], [], []>} : vector<8x128xbf16>, vector<128x8xbf16>, vector<8x8xf32> -> vector<8x8xf32>
    %c0_15 = arith.constant 0 : index
    %c0_16 = arith.constant 0 : index
    %20 = vector.load %arg7[%c0_15, %c0_16] : memref<1x8xf32, #tpu.memory_space<vmem>>, vector<1x8xf32>
    %21 = vector.broadcast %20 : vector<1x8xf32> to vector<8x8xf32>
    %22 = arith.addf %19, %21 : vector<8x8xf32>
    %c0_17 = arith.constant 0 : index
    %c0_18 = arith.constant 0 : index
    %23 = vector.load %arg8[%c0_17, %c0_18] : memref<8x8xf32, #tpu.memory_space<vmem>>, vector<8x8xf32>
    tpu.vector_store %arg8[%c0_17, %c0_18], %22 {strides = array<i32>} : memref<8x8xf32, #tpu.memory_space<vmem>>, vector<8x8xf32>,
    return
  }
  func.func @transform_0(%arg0: i32) -> (i32, i32) {
    %c0_i32 = arith.constant 0 : i32
    %c0_i32_0 = arith.constant 0 : i32
    return %arg0, %c0_i32 : i32, i32
  }
  func.func @transform_1(%arg0: i32) -> (i32, i32) {
    %c0_i32 = arith.constant 0 : i32
    %c0_i32_0 = arith.constant 0 : i32
    %c0_i32_1 = arith.constant 0 : i32
    return %c0_i32, %c0_i32_0 : i32, i32
  }
  func.func @transform_2(%arg0: i32) -> (i32, i32) {
    %c0_i32 = arith.constant 0 : i32
    %c0_i32_0 = arith.constant 0 : i32
    %c0_i32_1 = arith.constant 0 : i32
    return %c0_i32, %c0_i32_0 : i32, i32
  }
  func.func @transform_3(%arg0: i32) -> (i32, i32) {
    %c0_i32 = arith.constant 0 : i32
    %c0_i32_0 = arith.constant 0 : i32
    %c0_i32_1 = arith.constant 0 : i32
    return %c0_i32, %c0_i32_0 : i32, i32
  }
  func.func @transform_4(%arg0: i32) -> (i32, i32) {
    %c0_i32 = arith.constant 0 : i32
    %c0_i32_0 = arith.constant 0 : i32
    %c0_i32_1 = arith.constant 0 : i32
    return %c0_i32, %c0_i32_0 : i32, i32
  }
  func.func @transform_5(%arg0: i32) -> (i32, i32) {
    %c0_i32 = arith.constant 0 : i32
    %c0_i32_0 = arith.constant 0 : i32
    %c0_i32_1 = arith.constant 0 : i32
    return %c0_i32, %c0_i32_0 : i32, i32
  }
  func.func @transform_6(%arg0: i32) -> (i32, i32) {
    %c0_i32 = arith.constant 0 : i32
    %c0_i32_0 = arith.constant 0 : i32
    %c0_i32_1 = arith.constant 0 : i32
    return %c0_i32, %c0_i32_0 : i32, i32
  }
  func.func @transform_7(%arg0: i32) -> (i32, i32) {
    %c0_i32 = arith.constant 0 : i32
    %c0_i32_0 = arith.constant 0 : i32
    return %arg0, %c0_i32 : i32, i32
  }
}

module attributes {stable_mosaic.version = 11 : i64} {
  func.func @adaptive_net_kernel(%arg0: i32, %arg1: memref<8x16xf32, #tpu.memory_space<vmem>>, %arg2: memref<16x128xbf16, #tpu.memory_space<vmem>>, %arg3: memref<1x128xf32, #tpu.memory_space<vmem>>, %arg4: memref<128x128xbf16, #tpu.memory_space<vmem>>, %arg5: memref<1x128xf32, #tpu.memory_space<vmem>>, %arg6: memref<128x8xbf16, #tpu.memory_space<vmem>>, %arg7: memref<1x8xf32, #tpu.memory_space<vmem>>, %arg8: memref<8x8xf32, #tpu.memory_space<vmem>>) attributes {dimension_semantics = [#tpu.dimension_semantics<parallel>], iteration_bounds = array<i64: 1>, scalar_prefetch = 0 : i64, scratch_operands = 0 : i64, tpu.core_type = #tpu.core_type<tc>, window_params = [{transform_indices = @transform_0, window_bounds = array<i64: 8, 16>}, {pipeline_mode = #tpu.pipeline_mode<synchronous>, transform_indices = @transform_1, window_bounds = array<i64: 16, 128>}, {pipeline_mode = #tpu.pipeline_mode<synchronous>, transform_indices = @transform_2, window_bounds = array<i64: 1, 128>}, {pipeline_mode = #tpu.pipeline_mode<synchronous>, transform_indices = @transform_3, window_bounds = array<i64: 128, 128>}, {pipeline_mode = #tpu.pipeline_mode<synchronous>, transform_indices = @transform_4, window_bounds = array<i64: 1, 128>}, {pipeline_mode = #tpu.pipeline_mode<synchronous>, transform_indices = @transform_5, window_bounds = array<i64: 128, 8>}, {pipeline_mode = #tpu.pipeline_mode<synchronous>, transform_indices = @transform_6, window_bounds = array<i64: 1, 8>}, {transform_indices = @transform_7, window_bounds = array<i64: 8, 8>}]} {
    %c0 = arith.constant 0 : index
    %c0_0 = arith.constant 0 : index
    %0 = vector.load %arg1[%c0, %c0_0] : memref<8x16xf32, #tpu.memory_space<vmem>>, vector<8x16xf32>
    %1 = arith.truncf %0 : vector<8x16xf32> to vector<8x16xbf16>
    %c0_1 = arith.constant 0 : index
    %c0_2 = arith.constant 0 : index
    %2 = vector.load %arg2[%c0_1, %c0_2] : memref<16x128xbf16, #tpu.memory_space<vmem>>, vector<16x128xbf16>
    %cst = arith.constant dense<0.000000e+00> : vector<8x128xf32>
    %3 = tpu.matmul %1, %2, %cst {dimension_numbers = #tpu.dot_dimension_numbers<[1], [0], [0], [1], [0, 0, 1, 1], [], []>} : vector<8x16xbf16>, vector<16x128xbf16>, vector<8x128xf32> -> vector<8x128xf32>
    %c0_3 = arith.constant 0 : index
    %c0_4 = arith.constant 0 : index
    %4 = vector.load %arg3[%c0_3, %c0_4] : memref<1x128xf32, #tpu.memory_space<vmem>>, vector<1x128xf32>
    %5 = vector.broadcast %4 : vector<1x128xf32> to vector<8x128xf32>
    %6 = arith.addf %3, %5 : vector<8x128xf32>
    %cst_5 = arith.constant 0.000000e+00 : f32
    %7 = vector.broadcast %cst_5 : f32 to vector<8x128xf32>
    %8 = arith.maximumf %6, %7 : vector<8x128xf32>
    %9 = arith.truncf %8 : vector<8x128xf32> to vector<8x128xbf16>
    %c0_6 = arith.constant 0 : index
    %c0_7 = arith.constant 0 : index
    %10 = vector.load %arg4[%c0_6, %c0_7] : memref<128x128xbf16, #tpu.memory_space<vmem>>, vector<128x128xbf16>
    %cst_8 = arith.constant dense<0.000000e+00> : vector<8x128xf32>
    %11 = tpu.matmul %9, %10, %cst_8 {dimension_numbers = #tpu.dot_dimension_numbers<[1], [0], [0], [1], [0, 0, 1, 1], [], []>} : vector<8x128xbf16>, vector<128x128xbf16>, vector<8x128xf32> -> vector<8x128xf32>
    %c0_9 = arith.constant 0 : index
    %c0_10 = arith.constant 0 : index
    %12 = vector.load %arg5[%c0_9, %c0_10] : memref<1x128xf32, #tpu.memory_space<vmem>>, vector<1x128xf32>
    %13 = vector.broadcast %12 : vector<1x128xf32> to vector<8x128xf32>
    %14 = arith.addf %11, %13 : vector<8x128xf32>
    %cst_11 = arith.constant 0.000000e+00 : f32
    %15 = vector.broadcast %cst_11 : f32 to vector<8x128xf32>
    %16 = arith.maximumf %14, %15 : vector<8x128xf32>
    %17 = arith.truncf %16 : vector<8x128xf32> to vector<8x128xbf16>
    %c0_12 = arith.constant 0 : index
    %c0_13 = arith.constant 0 : index
    %18 = vector.load %arg6[%c0_12, %c0_13] : memref<128x8xbf16, #tpu.memory_space<vmem>>, vector<128x8xbf16>
    %cst_14 = arith.constant dense<0.000000e+00> : vector<8x8xf32>
    %19 = tpu.matmul %17, %18, %cst_14 {dimension_numbers = #tpu.dot_dimension_numbers<[1], [0], [0], [1], [0, 0, 1, 1], [], []>} : vector<8x128xbf16>, vector<128x8xbf16>, vector<8x8xf32> -> vector<8x8xf32>
    %c0_15 = arith.constant 0 : index
    %c0_16 = arith.constant 0 : index
    %20 = vector.load %arg7[%c0_15, %c0_16] : memref<1x8xf32, #tpu.memory_space<vmem>>, vector<1x8xf32>
    %21 = vector.broadcast %20 : vector<1x8xf32> to vector<8x8xf32>
    %22 = arith.addf %19, %21 : vector<8x8xf32>
    %c0_17 = arith.constant 0 : index
    %c0_18 = arith.constant 0 : index
    %23 = vector.load %arg8[%c0_17, %c0_18] : memref<8x8xf32, #tpu.memory_space<vmem>>, vector<8x8xf32>
    tpu.vector_store %arg8[%c0_17, %c0_18], %22 {strides = array<i32>} : memref<8x8xf32, #tpu.memory_space<vmem>>, vector<8x8xf32>,
    return
  }
  func.func @transform_0(%arg0: i32) -> (i32, i32) {
    %c0_i32 = arith.constant 0 : i32
    %c0_i32_0 = arith.constant 0 : i32
    return %arg0, %c0_i32 : i32, i32
  }
  func.func @transform_1(%arg0: i32) -> (i32, i32) {
    %c0_i32 = arith.constant 0 : i32
    %c0_i32_0 = arith.constant 0 : i32
    %c0_i32_1 = arith.constant 0 : i32
    return %c0_i32, %c0_i32_0 : i32, i32
  }
  func.func @transform_2(%arg0: i32) -> (i32, i32) {
    %c0_i32 = arith.constant 0 : i32
    %c0_i32_0 = arith.constant 0 : i32
    %c0_i32_1 = arith.constant 0 : i32
    return %c0_i32, %c0_i32_0 : i32, i32
  }
  func.func @transform_3(%arg0: i32) -> (i32, i32) {
    %c0_i32 = arith.constant 0 : i32
    %c0_i32_0 = arith.constant 0 : i32
    %c0_i32_1 = arith.constant 0 : i32
    return %c0_i32, %c0_i32_0 : i32, i32
  }
  func.func @transform_4(%arg0: i32) -> (i32, i32) {
    %c0_i32 = arith.constant 0 : i32
    %c0_i32_0 = arith.constant 0 : i32
    %c0_i32_1 = arith.constant 0 : i32
    return %c0_i32, %c0_i32_0 : i32, i32
  }
  func.func @transform_5(%arg0: i32) -> (i32, i32) {
    %c0_i32 = arith.constant 0 : i32
    %c0_i32_0 = arith.constant 0 : i32
    %c0_i32_1 = arith.constant 0 : i32
    return %c0_i32, %c0_i32_0 : i32, i32
  }
  func.func @transform_6(%arg0: i32) -> (i32, i32) {
    %c0_i32 = arith.constant 0 : i32
    %c0_i32_0 = arith.constant 0 : i32
    %c0_i32_1 = arith.constant 0 : i32
    return %c0_i32, %c0_i32_0 : i32, i32
  }
  func.func @transform_7(%arg0: i32) -> (i32, i32) {
    %c0_i32 = arith.constant 0 : i32
    %c0_i32_0 = arith.constant 0 : i32
    return %arg0, %c0_i32 : i32, i32
  }
}

</mosaic_0001>

<llo_original>
// kernel: forward.1
$region0: #{forward.1}
  #allocation0 [shape = 'u32[]', space=smem, size = 0x4, offset = 0x4, fixed_abs, tag = 'smem constant byte address 0x4 - core index']
  #allocation1 [shape = 'u32[144,128]{1,0:T(1,128)}', space=vmem, size = 0x12000, scoped, tag = 'internal scratch']
  %s0 = inlined_call_operand.vmem [shape: f32[8,16], index: 0, kind: input, shape index: {}]
  %s1 = inlined_call_operand.vmem [shape: bf16[16,128], index: 1, kind: input, shape index: {}]
  %s2 = inlined_call_operand.vmem [shape: f32[1,128], index: 2, kind: input, shape index: {}]
  %s3 = inlined_call_operand.hbm [shape: bf16[128,128], index: 3, kind: input, shape index: {}]
  %s4 = inlined_call_operand.vmem [shape: f32[1,128], index: 4, kind: input, shape index: {}]
  %s5 = inlined_call_operand.hbm [shape: bf16[128,8], index: 5, kind: input, shape index: {}]
  %s6 = inlined_call_operand.vmem [shape: f32[1,8], index: 6, kind: input, shape index: {}]
  %s7 = inlined_call_operand.vmem [shape: f32[8,8], index: 7, kind: output, shape index: {}]
  %s8 = sld [smem:[#allocation0]]
  $region46: #{forward.1} parent=0
    _
  %s10 = ssub.s32 1, %s8
  %s11 = scalar_select 0, %s10, %s8
  $region1: #{forward.1} parent=0
    #allocation2 [shape = 'u8[32768]{0}', space=vmem, size = 0x8000, scoped, tag = 'input window, operand 3, single buffered']
    #allocation3 [shape = 's32[1]{0}', space=sflag, size = 0x4, scoped, tag = 'scoped memory for forward.1']
    #allocation4 [shape = 'u8[32768]{0}', space=vmem, size = 0x8000, scoped, tag = 'input window, operand 5, single buffered']
    #allocation5 [shape = 's32[1]{0}', space=sflag, size = 0x4, scoped, tag = 'scoped memory for forward.1']
    %12 = vsyncpa [#allocation3], 0
    %13 = vsyncpa [#allocation5], 0
    // Predicated region
    $region2: #{forward.1} parent=1 // pred_check
      _
    $region3: #{forward.1} parent=1 // pred_check_branch
      %15 = sbr.rel (0) target = $region5
    $region4: #{forward.1} parent=1 // pred_region
      _
    $region5: #{forward.1} parent=1 // pred_fallthru
      _
    // Predicated region
    $region6: #{forward.1} parent=1 // pred_check
      _
    $region7: #{forward.1} parent=1 // pred_check_branch
      %17 = sbr.rel (0) target = $region9
    $region8: #{forward.1} parent=1 // pred_region
      _
    $region9: #{forward.1} parent=1 // pred_fallthru
      _
    // Predicated region
    $region10: #{forward.1} parent=1 // pred_check
      _
    $region11: #{forward.1} parent=1 // pred_check_branch
      %19 = sbr.rel (0) target = $region13
    $region12: #{forward.1} parent=1 // pred_region
      _
    $region13: #{forward.1} parent=1 // pred_fallthru
      _
    // Predicated region
    $region14: #{forward.1} parent=1 // pred_check
      _
    $region15: #{forward.1} parent=1 // pred_check_branch
      %21 = sbr.rel (0) target = $region17
    $region16: #{forward.1} parent=1 // pred_region
      %s23 = ssub.s32 1024, 1024
      %24 = vsyncadd [#allocation3], %s23
      %s25 = sshll.u32 [#allocation2], 4
      %s26 = int_to_ptr.vmem [resolvable:$true] %s25
      %31 = dma.hbm_to_vmem [thread:$0]  %s3, 1024, %s26, [#allocation3], 64, 64, 4
    $region17: #{forward.1} parent=1 // pred_fallthru
      _
    // Predicated region
    $region18: #{forward.1} parent=1 // pred_check
      _
    $region19: #{forward.1} parent=1 // pred_check_branch
      %33 = sbr.rel (0) target = $region21
    $region20: #{forward.1} parent=1 // pred_region
      _
    $region21: #{forward.1} parent=1 // pred_fallthru
      _
    // Predicated region
    $region22: #{forward.1} parent=1 // pred_check
      _
    $region23: #{forward.1} parent=1 // pred_check_branch
      %35 = sbr.rel (0) target = $region25
    $region24: #{forward.1} parent=1 // pred_region
      %s37 = ssub.s32 1024, 1024
      %38 = vsyncadd [#allocation5], %s37
      %s39 = sshll.u32 [#allocation4], 4
      %s40 = int_to_ptr.vmem [resolvable:$true] %s39
      %45 = dma.hbm_to_vmem [thread:$0]  %s5, 1024, %s40, [#allocation5], 64, 64, 4
    $region25: #{forward.1} parent=1 // pred_fallthru
      _
    // Predicated region
    $region26: #{forward.1} parent=1 // pred_check
      _
    $region27: #{forward.1} parent=1 // pred_check_branch
      %47 = sbr.rel (0) target = $region29
    $region28: #{forward.1} parent=1 // pred_region
      _
    $region29: #{forward.1} parent=1 // pred_fallthru
      _
    // Predicated region
    $region30: #{forward.1} parent=1 // pred_check
      _
    $region31: #{forward.1} parent=1 // pred_check_branch
      %49 = sbr.rel (0) target = $region33
    $region32: #{forward.1} parent=1 // pred_region
      %50 = dma.done [#allocation3], 1024
    $region33: #{forward.1} parent=1 // pred_fallthru
      _
    // Predicated region
    $region34: #{forward.1} parent=1 // pred_check
      _
    $region35: #{forward.1} parent=1 // pred_check_branch
      %52 = sbr.rel (0) target = $region37
    $region36: #{forward.1} parent=1 // pred_region
      %53 = dma.done [#allocation5], 1024
    $region37: #{forward.1} parent=1 // pred_fallthru
      _
    %v55 = vld [vmem:[%s0] sm:$0xff]
    %v56 = vpack.c.bf16 %v55, %v55
    %v57 = vld [vmem:[%s1] sm:$0xf]
    %v58 = vld [vmem:[%s1 + $0x4] sm:$0xf]
    %v59 = vld [vmem:[%s2] sm:$0x1]
    %v61 = vlaneseq
    %v62 = vshrl.u32 %v61, 7
    %v63 = vsub.s32 0, %v62
    %v64 = vrot.slane %v59, %v63
    %v68 = vunpack.c.l.b16 %v57
    %v69 = vunpack.c.l.b16 %v58
    %v70 = vpack.c.b16 %v69, %v68
    %vm72 = vcmask 130048
    %v74 = vsel %vm72, %v56, 0
    %76 = vmatprep.subr.bf16.mxu0 0
    %77 = vmatpush1.bf16.msra.mxu0 0
    %78 = vmatprep.subr.bf16.mxu0 0
    %79 = vmatpush1.bf16.msra.mxu0 0
    %80 = vmatprep.subr.bf16.mxu0 0
    %81 = vmatpush1.bf16.msra.mxu0 0
    %82 = vmatprep.subr.bf16.mxu0 0
    %83 = vmatpush1.bf16.msra.mxu0 0
    %84 = vmatprep.subr.bf16.mxu0 0
    %85 = vmatpush1.bf16.msra.mxu0 0
    %86 = vmatprep.subr.bf16.mxu0 0
    %87 = vmatpush1.bf16.msra.mxu0 0
    %88 = vmatprep.subr.bf16.mxu0 0
    %89 = vmatpush1.bf16.msra.mxu0 0
    %90 = vmatprep.subr.bf16.mxu0 0
    %91 = vmatpush1.bf16.msra.mxu0 %v70
    %92 = vmatprep.subr.bf16.mxu0 0
    %93 = vmatpush2.bf16.msra.mxu0 0
    %94 = vmatprep.subr.bf16.mxu0 0
    %95 = vmatpush2.bf16.msra.mxu0 0
    %96 = vmatprep.subr.bf16.mxu0 0
    %97 = vmatpush2.bf16.msra.mxu0 0
    %98 = vmatprep.subr.bf16.mxu0 0
    %99 = vmatpush2.bf16.msra.mxu0 0
    %100 = vmatprep.subr.bf16.mxu0 0
    %101 = vmatpush2.bf16.msra.mxu0 0
    %102 = vmatprep.subr.bf16.mxu0 0
    %103 = vmatpush2.bf16.msra.mxu0 0
    %104 = vmatprep.subr.bf16.mxu0 0
    %105 = vmatpush2.bf16.msra.mxu0 0
    %106 = vmatprep.subr.bf16.mxu0 0
    %107 = vmatpush2.bf16.msra.mxu0 0
    %108 = vmatprep.mubr.bf16.mxu0 0
    %109 = vmatmul.mubr.bf16.gmra.mxu0 %v74
    %v110 = vpop.f32.mrf.mxu0
    %v111 = vadd.f32 %v64, %v110
    %v112 = vpop.f32.mrf.mxu0
    %v113 = vpop.f32.mrf.mxu0
    %v114 = vpop.f32.mrf.mxu0
    %115 = vdwg.mxu0
    %v116 = vmax.f32 %v111, 0.0
    %v117 = vpack.c.bf16 %v116, %v116
    %v118 = vld [vmem:[#allocation2] sm:$0xf]
    %v119 = vld [vmem:[#allocation2 + $0x4] sm:$0xf]
    %v120 = vld [vmem:[#allocation2 + $0x8] sm:$0xf]
    %v121 = vld [vmem:[#allocation2 + $0xc] sm:$0xf]
    %v122 = vld [vmem:[#allocation2 + $0x10] sm:$0xf]
    %v123 = vld [vmem:[#allocation2 + $0x14] sm:$0xf]
    %v124 = vld [vmem:[#allocation2 + $0x18] sm:$0xf]
    %v125 = vld [vmem:[#allocation2 + $0x1c] sm:$0xf]
    %v126 = vld [vmem:[#allocation2 + $0x20] sm:$0xf]
    %v127 = vld [vmem:[#allocation2 + $0x24] sm:$0xf]
    %v128 = vld [vmem:[#allocation2 + $0x28] sm:$0xf]
    %v129 = vld [vmem:[#allocation2 + $0x2c] sm:$0xf]
    %v130 = vld [vmem:[#allocation2 + $0x30] sm:$0xf]
    %v131 = vld [vmem:[#allocation2 + $0x34] sm:$0xf]
    %v132 = vld [vmem:[#allocation2 + $0x38] sm:$0xf]
    %v133 = vld [vmem:[#allocation2 + $0x3c] sm:$0xf]
    %v134 = vld [vmem:[%s4] sm:$0x1]
    %v136 = vlaneseq
    %v137 = vshrl.u32 %v136, 7
    %v138 = vsub.s32 0, %v137
    %v139 = vrot.slane %v134, %v138
    %v157 = vunpack.c.l.b16 %v118
    %v158 = vunpack.c.l.b16 %v119
    %v159 = vunpack.c.l.b16 %v120
    %v160 = vunpack.c.l.b16 %v121
    %v161 = vunpack.c.l.b16 %v122
    %v162 = vunpack.c.l.b16 %v123
    %v163 = vunpack.c.l.b16 %v124
    %v164 = vunpack.c.l.b16 %v125
    %v165 = vunpack.c.l.b16 %v126
    %v166 = vunpack.c.l.b16 %v127
    %v167 = vunpack.c.l.b16 %v128
    %v168 = vunpack.c.l.b16 %v129
    %v169 = vunpack.c.l.b16 %v130
    %v170 = vunpack.c.l.b16 %v131
    %v171 = vunpack.c.l.b16 %v132
    %v172 = vunpack.c.l.b16 %v133
    %v173 = vpack.c.b16 %v158, %v157
    %v174 = vpack.c.b16 %v160, %v159
    %v175 = vpack.c.b16 %v162, %v161
    %v176 = vpack.c.b16 %v164, %v163
    %v177 = vpack.c.b16 %v166, %v165
    %v178 = vpack.c.b16 %v168, %v167
    %v179 = vpack.c.b16 %v170, %v169
    %v180 = vpack.c.b16 %v172, %v171
    %189 = vmatprep.subr.bf16.mxu0 0
    %190 = vmatpush1.bf16.msra.mxu0 %v180
    %191 = vmatprep.subr.bf16.mxu0 0
    %192 = vmatpush1.bf16.msra.mxu0 %v179
    %193 = vmatprep.subr.bf16.mxu0 0
    %194 = vmatpush1.bf16.msra.mxu0 %v178
    %195 = vmatprep.subr.bf16.mxu0 0
    %196 = vmatpush1.bf16.msra.mxu0 %v177
    %197 = vmatprep.subr.bf16.mxu0 0
    %198 = vmatpush1.bf16.msra.mxu0 %v176
    %199 = vmatprep.subr.bf16.mxu0 0
    %200 = vmatpush1.bf16.msra.mxu0 %v175
    %201 = vmatprep.subr.bf16.mxu0 0
    %202 = vmatpush1.bf16.msra.mxu0 %v174
    %203 = vmatprep.subr.bf16.mxu0 0
    %204 = vmatpush1.bf16.msra.mxu0 %v173
    %205 = vmatprep.subr.bf16.mxu0 0
    %206 = vmatpush2.bf16.msra.mxu0 0
    %207 = vmatprep.subr.bf16.mxu0 0
    %208 = vmatpush2.bf16.msra.mxu0 0
    %209 = vmatprep.subr.bf16.mxu0 0
    %210 = vmatpush2.bf16.msra.mxu0 0
    %211 = vmatprep.subr.bf16.mxu0 0
    %212 = vmatpush2.bf16.msra.mxu0 0
    %213 = vmatprep.subr.bf16.mxu0 0
    %214 = vmatpush2.bf16.msra.mxu0 0
    %215 = vmatprep.subr.bf16.mxu0 0
    %216 = vmatpush2.bf16.msra.mxu0 0
    %217 = vmatprep.subr.bf16.mxu0 0
    %218 = vmatpush2.bf16.msra.mxu0 0
    %219 = vmatprep.subr.bf16.mxu0 0
    %220 = vmatpush2.bf16.msra.mxu0 0
    %221 = vmatprep.mubr.bf16.mxu0 0
    %222 = vmatmul.mubr.bf16.gmra.mxu0 %v117
    %v223 = vpop.f32.mrf.mxu0
    %v224 = vadd.f32 %v139, %v223
    %v225 = vpop.f32.mrf.mxu0
    %v226 = vpop.f32.mrf.mxu0
    %v227 = vpop.f32.mrf.mxu0
    %228 = vdwg.mxu0
    %v229 = vmax.f32 %v224, 0.0
    %v230 = vpack.c.bf16 %v229, %v229
    %v231 = vld [vmem:[#allocation4] sm:$0xf]
    %v232 = vld [vmem:[#allocation4 + $0x4] sm:$0xf]
    %v233 = vld [vmem:[#allocation4 + $0x8] sm:$0xf]
    %v234 = vld [vmem:[#allocation4 + $0xc] sm:$0xf]
    %v235 = vld [vmem:[#allocation4 + $0x10] sm:$0xf]
    %v236 = vld [vmem:[#allocation4 + $0x14] sm:$0xf]
    %v237 = vld [vmem:[#allocation4 + $0x18] sm:$0xf]
    %v238 = vld [vmem:[#allocation4 + $0x1c] sm:$0xf]
    %v239 = vld [vmem:[#allocation4 + $0x20] sm:$0xf]
    %v240 = vld [vmem:[#allocation4 + $0x24] sm:$0xf]
    %v241 = vld [vmem:[#allocation4 + $0x28] sm:$0xf]
    %v242 = vld [vmem:[#allocation4 + $0x2c] sm:$0xf]
    %v243 = vld [vmem:[#allocation4 + $0x30] sm:$0xf]
    %v244 = vld [vmem:[#allocation4 + $0x34] sm:$0xf]
    %v245 = vld [vmem:[#allocation4 + $0x38] sm:$0xf]
    %v246 = vld [vmem:[#allocation4 + $0x3c] sm:$0xf]
    %v247 = vld [vmem:[%s6] sm:$0x1]
    %v249 = vlaneseq
    %v250 = vshrl.u32 %v249, 7
    %v251 = vsub.s32 0, %v250
    %v252 = vrot.slane %v247, %v251
    %v270 = vunpack.c.l.b16 %v231
    %v271 = vunpack.c.l.b16 %v232
    %v272 = vunpack.c.l.b16 %v233
    %v273 = vunpack.c.l.b16 %v234
    %v274 = vunpack.c.l.b16 %v235
    %v275 = vunpack.c.l.b16 %v236
    %v276 = vunpack.c.l.b16 %v237
    %v277 = vunpack.c.l.b16 %v238
    %v278 = vunpack.c.l.b16 %v239
    %v279 = vunpack.c.l.b16 %v240
    %v280 = vunpack.c.l.b16 %v241
    %v281 = vunpack.c.l.b16 %v242
    %v282 = vunpack.c.l.b16 %v243
    %v283 = vunpack.c.l.b16 %v244
    %v284 = vunpack.c.l.b16 %v245
    %v285 = vunpack.c.l.b16 %v246
    %v286 = vpack.c.b16 %v271, %v270
    %v287 = vpack.c.b16 %v273, %v272
    %v288 = vpack.c.b16 %v275, %v274
    %v289 = vpack.c.b16 %v277, %v276
    %v290 = vpack.c.b16 %v279, %v278
    %v291 = vpack.c.b16 %v281, %v280
    %v292 = vpack.c.b16 %v283, %v282
    %v293 = vpack.c.b16 %v285, %v284
    %302 = vmatprep.subr.bf16.mxu0 0
    %303 = vmatpush1.bf16.msra.mxu0 %v293
    %304 = vmatprep.subr.bf16.mxu0 0
    %305 = vmatpush1.bf16.msra.mxu0 %v292
    %306 = vmatprep.subr.bf16.mxu0 0
    %307 = vmatpush1.bf16.msra.mxu0 %v291
    %308 = vmatprep.subr.bf16.mxu0 0
    %309 = vmatpush1.bf16.msra.mxu0 %v290
    %310 = vmatprep.subr.bf16.mxu0 0
    %311 = vmatpush1.bf16.msra.mxu0 %v289
    %312 = vmatprep.subr.bf16.mxu0 0
    %313 = vmatpush1.bf16.msra.mxu0 %v288
    %314 = vmatprep.subr.bf16.mxu0 0
    %315 = vmatpush1.bf16.msra.mxu0 %v287
    %316 = vmatprep.subr.bf16.mxu0 0
    %317 = vmatpush1.bf16.msra.mxu0 %v286
    %318 = vmatprep.subr.bf16.mxu0 0
    %319 = vmatpush2.bf16.msra.mxu0 0
    %320 = vmatprep.subr.bf16.mxu0 0
    %321 = vmatpush2.bf16.msra.mxu0 0
    %322 = vmatprep.subr.bf16.mxu0 0
    %323 = vmatpush2.bf16.msra.mxu0 0
    %324 = vmatprep.subr.bf16.mxu0 0
    %325 = vmatpush2.bf16.msra.mxu0 0
    %326 = vmatprep.subr.bf16.mxu0 0
    %327 = vmatpush2.bf16.msra.mxu0 0
    %328 = vmatprep.subr.bf16.mxu0 0
    %329 = vmatpush2.bf16.msra.mxu0 0
    %330 = vmatprep.subr.bf16.mxu0 0
    %331 = vmatpush2.bf16.msra.mxu0 0
    %332 = vmatprep.subr.bf16.mxu0 0
    %333 = vmatpush2.bf16.msra.mxu0 0
    %334 = vmatprep.mubr.bf16.mxu0 0
    %335 = vmatmul.mubr.bf16.gmra.mxu0 %v230
    %v336 = vpop.f32.mrf.mxu0
    %v337 = vadd.f32 %v252, %v336
    %v338 = vpop.f32.mrf.mxu0
    %v339 = vpop.f32.mrf.mxu0
    %v340 = vpop.f32.mrf.mxu0
    %341 = vdwg.mxu0
    %vm342 = vcmask 64512
    %343 = vst.msk [vmem:[%s7] sm:$0xff] %vm342, %v337
    // Predicated region
    $region38: #{forward.1} parent=1 // pred_check
      _
    $region39: #{forward.1} parent=1 // pred_check_branch
      %345 = sbr.rel (0) target = $region41
    $region40: #{forward.1} parent=1 // pred_region
      _
    $region41: #{forward.1} parent=1 // pred_fallthru
      _
    // Predicated region
    $region42: #{forward.1} parent=1 // pred_check
      _
    $region43: #{forward.1} parent=1 // pred_check_branch
      %347 = sbr.rel (0) target = $region45
    $region44: #{forward.1} parent=1 // pred_region
      _
    $region45: #{forward.1} parent=1 // pred_fallthru
      _
    %348 = vsyncpa [#allocation3], 1
    %349 = vsyncpa [#allocation5], 1

// kernel: forward.1
$region0: #{forward.1}
  #allocation0 [shape = 'u32[]', space=smem, size = 0x4, offset = 0x4, fixed_abs, tag = 'smem constant byte address 0x4 - core index']
  #allocation1 [shape = 'u32[144,128]{1,0:T(1,128)}', space=vmem, size = 0x12000, scoped, tag = 'internal scratch']
  %s0 = inlined_call_operand.vmem [shape: f32[8,16], index: 0, kind: input, shape index: {}]
  %s1 = inlined_call_operand.vmem [shape: bf16[16,128], index: 1, kind: input, shape index: {}]
  %s2 = inlined_call_operand.vmem [shape: f32[1,128], index: 2, kind: input, shape index: {}]
  %s3 = inlined_call_operand.hbm [shape: bf16[128,128], index: 3, kind: input, shape index: {}]
  %s4 = inlined_call_operand.vmem [shape: f32[1,128], index: 4, kind: input, shape index: {}]
  %s5 = inlined_call_operand.hbm [shape: bf16[128,8], index: 5, kind: input, shape index: {}]
  %s6 = inlined_call_operand.vmem [shape: f32[1,8], index: 6, kind: input, shape index: {}]
  %s7 = inlined_call_operand.vmem [shape: f32[8,8], index: 7, kind: output, shape index: {}]
  %s8 = sld [smem:[#allocation0]]
  $region46: #{forward.1} parent=0
    _
  %s10 = ssub.s32 1, %s8
  %s11 = scalar_select 0, %s10, %s8
  $region1: #{forward.1} parent=0
    #allocation2 [shape = 'u8[32768]{0}', space=vmem, size = 0x8000, scoped, tag = 'input window, operand 3, single buffered']
    #allocation3 [shape = 's32[1]{0}', space=sflag, size = 0x4, scoped, tag = 'scoped memory for forward.1']
    #allocation4 [shape = 'u8[32768]{0}', space=vmem, size = 0x8000, scoped, tag = 'input window, operand 5, single buffered']
    #allocation5 [shape = 's32[1]{0}', space=sflag, size = 0x4, scoped, tag = 'scoped memory for forward.1']
    %12 = vsyncpa [#allocation3], 0
    %13 = vsyncpa [#allocation5], 0
    // Predicated region
    $region2: #{forward.1} parent=1 // pred_check
      _
    $region3: #{forward.1} parent=1 // pred_check_branch
      %15 = sbr.rel (0) target = $region5
    $region4: #{forward.1} parent=1 // pred_region
      _
    $region5: #{forward.1} parent=1 // pred_fallthru
      _
    // Predicated region
    $region6: #{forward.1} parent=1 // pred_check
      _
    $region7: #{forward.1} parent=1 // pred_check_branch
      %17 = sbr.rel (0) target = $region9
    $region8: #{forward.1} parent=1 // pred_region
      _
    $region9: #{forward.1} parent=1 // pred_fallthru
      _
    // Predicated region
    $region10: #{forward.1} parent=1 // pred_check
      _
    $region11: #{forward.1} parent=1 // pred_check_branch
      %19 = sbr.rel (0) target = $region13
    $region12: #{forward.1} parent=1 // pred_region
      _
    $region13: #{forward.1} parent=1 // pred_fallthru
      _
    // Predicated region
    $region14: #{forward.1} parent=1 // pred_check
      _
    $region15: #{forward.1} parent=1 // pred_check_branch
      %21 = sbr.rel (0) target = $region17
    $region16: #{forward.1} parent=1 // pred_region
      %s23 = ssub.s32 1024, 1024
      %24 = vsyncadd [#allocation3], %s23
      %s25 = sshll.u32 [#allocation2], 4
      %s26 = int_to_ptr.vmem [resolvable:$true] %s25
      %31 = dma.hbm_to_vmem [thread:$0]  %s3, 1024, %s26, [#allocation3], 64, 64, 4
    $region17: #{forward.1} parent=1 // pred_fallthru
      _
    // Predicated region
    $region18: #{forward.1} parent=1 // pred_check
      _
    $region19: #{forward.1} parent=1 // pred_check_branch
      %33 = sbr.rel (0) target = $region21
    $region20: #{forward.1} parent=1 // pred_region
      _
    $region21: #{forward.1} parent=1 // pred_fallthru
      _
    // Predicated region
    $region22: #{forward.1} parent=1 // pred_check
      _
    $region23: #{forward.1} parent=1 // pred_check_branch
      %35 = sbr.rel (0) target = $region25
    $region24: #{forward.1} parent=1 // pred_region
      %s37 = ssub.s32 1024, 1024
      %38 = vsyncadd [#allocation5], %s37
      %s39 = sshll.u32 [#allocation4], 4
      %s40 = int_to_ptr.vmem [resolvable:$true] %s39
      %45 = dma.hbm_to_vmem [thread:$0]  %s5, 1024, %s40, [#allocation5], 64, 64, 4
    $region25: #{forward.1} parent=1 // pred_fallthru
      _
    // Predicated region
    $region26: #{forward.1} parent=1 // pred_check
      _
    $region27: #{forward.1} parent=1 // pred_check_branch
      %47 = sbr.rel (0) target = $region29
    $region28: #{forward.1} parent=1 // pred_region
      _
    $region29: #{forward.1} parent=1 // pred_fallthru
      _
    // Predicated region
    $region30: #{forward.1} parent=1 // pred_check
      _
    $region31: #{forward.1} parent=1 // pred_check_branch
      %49 = sbr.rel (0) target = $region33
    $region32: #{forward.1} parent=1 // pred_region
      %50 = dma.done [#allocation3], 1024
    $region33: #{forward.1} parent=1 // pred_fallthru
      _
    // Predicated region
    $region34: #{forward.1} parent=1 // pred_check
      _
    $region35: #{forward.1} parent=1 // pred_check_branch
      %52 = sbr.rel (0) target = $region37
    $region36: #{forward.1} parent=1 // pred_region
      %53 = dma.done [#allocation5], 1024
    $region37: #{forward.1} parent=1 // pred_fallthru
      _
    %v55 = vld [vmem:[%s0] sm:$0xff]
    %v56 = vpack.c.bf16 %v55, %v55
    %v57 = vld [vmem:[%s1] sm:$0xf]
    %v58 = vld [vmem:[%s1 + $0x4] sm:$0xf]
    %v59 = vld [vmem:[%s2] sm:$0x1]
    %v61 = vlaneseq
    %v62 = vshrl.u32 %v61, 7
    %v63 = vsub.s32 0, %v62
    %v64 = vrot.slane %v59, %v63
    %v68 = vunpack.c.l.b16 %v57
    %v69 = vunpack.c.l.b16 %v58
    %v70 = vpack.c.b16 %v69, %v68
    %vm72 = vcmask 130048
    %v74 = vsel %vm72, %v56, 0
    %76 = vmatprep.subr.bf16.mxu0 0
    %77 = vmatpush1.bf16.msra.mxu0 0
    %78 = vmatprep.subr.bf16.mxu0 0
    %79 = vmatpush1.bf16.msra.mxu0 0
    %80 = vmatprep.subr.bf16.mxu0 0
    %81 = vmatpush1.bf16.msra.mxu0 0
    %82 = vmatprep.subr.bf16.mxu0 0
    %83 = vmatpush1.bf16.msra.mxu0 0
    %84 = vmatprep.subr.bf16.mxu0 0
    %85 = vmatpush1.bf16.msra.mxu0 0
    %86 = vmatprep.subr.bf16.mxu0 0
    %87 = vmatpush1.bf16.msra.mxu0 0
    %88 = vmatprep.subr.bf16.mxu0 0
    %89 = vmatpush1.bf16.msra.mxu0 0
    %90 = vmatprep.subr.bf16.mxu0 0
    %91 = vmatpush1.bf16.msra.mxu0 %v70
    %92 = vmatprep.subr.bf16.mxu0 0
    %93 = vmatpush2.bf16.msra.mxu0 0
    %94 = vmatprep.subr.bf16.mxu0 0
    %95 = vmatpush2.bf16.msra.mxu0 0
    %96 = vmatprep.subr.bf16.mxu0 0
    %97 = vmatpush2.bf16.msra.mxu0 0
    %98 = vmatprep.subr.bf16.mxu0 0
    %99 = vmatpush2.bf16.msra.mxu0 0
    %100 = vmatprep.subr.bf16.mxu0 0
    %101 = vmatpush2.bf16.msra.mxu0 0
    %102 = vmatprep.subr.bf16.mxu0 0
    %103 = vmatpush2.bf16.msra.mxu0 0
    %104 = vmatprep.subr.bf16.mxu0 0
    %105 = vmatpush2.bf16.msra.mxu0 0
    %106 = vmatprep.subr.bf16.mxu0 0
    %107 = vmatpush2.bf16.msra.mxu0 0
    %108 = vmatprep.mubr.bf16.mxu0 0
    %109 = vmatmul.mubr.bf16.gmra.mxu0 %v74
    %v110 = vpop.f32.mrf.mxu0
    %v111 = vadd.f32 %v64, %v110
    %v112 = vpop.f32.mrf.mxu0
    %v113 = vpop.f32.mrf.mxu0
    %v114 = vpop.f32.mrf.mxu0
    %115 = vdwg.mxu0
    %v116 = vmax.f32 %v111, 0.0
    %v117 = vpack.c.bf16 %v116, %v116
    %v118 = vld [vmem:[#allocation2] sm:$0xf]
    %v119 = vld [vmem:[#allocation2 + $0x4] sm:$0xf]
    %v120 = vld [vmem:[#allocation2 + $0x8] sm:$0xf]
    %v121 = vld [vmem:[#allocation2 + $0xc] sm:$0xf]
    %v122 = vld [vmem:[#allocation2 + $0x10] sm:$0xf]
    %v123 = vld [vmem:[#allocation2 + $0x14] sm:$0xf]
    %v124 = vld [vmem:[#allocation2 + $0x18] sm:$0xf]
    %v125 = vld [vmem:[#allocation2 + $0x1c] sm:$0xf]
    %v126 = vld [vmem:[#allocation2 + $0x20] sm:$0xf]
    %v127 = vld [vmem:[#allocation2 + $0x24] sm:$0xf]
    %v128 = vld [vmem:[#allocation2 + $0x28] sm:$0xf]
    %v129 = vld [vmem:[#allocation2 + $0x2c] sm:$0xf]
    %v130 = vld [vmem:[#allocation2 + $0x30] sm:$0xf]
    %v131 = vld [vmem:[#allocation2 + $0x34] sm:$0xf]
    %v132 = vld [vmem:[#allocation2 + $0x38] sm:$0xf]
    %v133 = vld [vmem:[#allocation2 + $0x3c] sm:$0xf]
    %v134 = vld [vmem:[%s4] sm:$0x1]
    %v136 = vlaneseq
    %v137 = vshrl.u32 %v136, 7
    %v138 = vsub.s32 0, %v137
    %v139 = vrot.slane %v134, %v138
    %v157 = vunpack.c.l.b16 %v118
    %v158 = vunpack.c.l.b16 %v119
    %v159 = vunpack.c.l.b16 %v120
    %v160 = vunpack.c.l.b16 %v121
    %v161 = vunpack.c.l.b16 %v122
    %v162 = vunpack.c.l.b16 %v123
    %v163 = vunpack.c.l.b16 %v124
    %v164 = vunpack.c.l.b16 %v125
    %v165 = vunpack.c.l.b16 %v126
    %v166 = vunpack.c.l.b16 %v127
    %v167 = vunpack.c.l.b16 %v128
    %v168 = vunpack.c.l.b16 %v129
    %v169 = vunpack.c.l.b16 %v130
    %v170 = vunpack.c.l.b16 %v131
    %v171 = vunpack.c.l.b16 %v132
    %v172 = vunpack.c.l.b16 %v133
    %v173 = vpack.c.b16 %v158, %v157
    %v174 = vpack.c.b16 %v160, %v159
    %v175 = vpack.c.b16 %v162, %v161
    %v176 = vpack.c.b16 %v164, %v163
    %v177 = vpack.c.b16 %v166, %v165
    %v178 = vpack.c.b16 %v168, %v167
    %v179 = vpack.c.b16 %v170, %v169
    %v180 = vpack.c.b16 %v172, %v171
    %189 = vmatprep.subr.bf16.mxu0 0
    %190 = vmatpush1.bf16.msra.mxu0 %v180
    %191 = vmatprep.subr.bf16.mxu0 0
    %192 = vmatpush1.bf16.msra.mxu0 %v179
    %193 = vmatprep.subr.bf16.mxu0 0
    %194 = vmatpush1.bf16.msra.mxu0 %v178
    %195 = vmatprep.subr.bf16.mxu0 0
    %196 = vmatpush1.bf16.msra.mxu0 %v177
    %197 = vmatprep.subr.bf16.mxu0 0
    %198 = vmatpush1.bf16.msra.mxu0 %v176
    %199 = vmatprep.subr.bf16.mxu0 0
    %200 = vmatpush1.bf16.msra.mxu0 %v175
    %201 = vmatprep.subr.bf16.mxu0 0
    %202 = vmatpush1.bf16.msra.mxu0 %v174
    %203 = vmatprep.subr.bf16.mxu0 0
    %204 = vmatpush1.bf16.msra.mxu0 %v173
    %205 = vmatprep.subr.bf16.mxu0 0
    %206 = vmatpush2.bf16.msra.mxu0 0
    %207 = vmatprep.subr.bf16.mxu0 0
    %208 = vmatpush2.bf16.msra.mxu0 0
    %209 = vmatprep.subr.bf16.mxu0 0
    %210 = vmatpush2.bf16.msra.mxu0 0
    %211 = vmatprep.subr.bf16.mxu0 0
    %212 = vmatpush2.bf16.msra.mxu0 0
    %213 = vmatprep.subr.bf16.mxu0 0
    %214 = vmatpush2.bf16.msra.mxu0 0
    %215 = vmatprep.subr.bf16.mxu0 0
    %216 = vmatpush2.bf16.msra.mxu0 0
    %217 = vmatprep.subr.bf16.mxu0 0
    %218 = vmatpush2.bf16.msra.mxu0 0
    %219 = vmatprep.subr.bf16.mxu0 0
    %220 = vmatpush2.bf16.msra.mxu0 0
    %221 = vmatprep.mubr.bf16.mxu0 0
    %222 = vmatmul.mubr.bf16.gmra.mxu0 %v117
    %v223 = vpop.f32.mrf.mxu0
    %v224 = vadd.f32 %v139, %v223
    %v225 = vpop.f32.mrf.mxu0
    %v226 = vpop.f32.mrf.mxu0
    %v227 = vpop.f32.mrf.mxu0
    %228 = vdwg.mxu0
    %v229 = vmax.f32 %v224, 0.0
    %v230 = vpack.c.bf16 %v229, %v229
    %v231 = vld [vmem:[#allocation4] sm:$0xf]
    %v232 = vld [vmem:[#allocation4 + $0x4] sm:$0xf]
    %v233 = vld [vmem:[#allocation4 + $0x8] sm:$0xf]
    %v234 = vld [vmem:[#allocation4 + $0xc] sm:$0xf]
    %v235 = vld [vmem:[#allocation4 + $0x10] sm:$0xf]
    %v236 = vld [vmem:[#allocation4 + $0x14] sm:$0xf]
    %v237 = vld [vmem:[#allocation4 + $0x18] sm:$0xf]
    %v238 = vld [vmem:[#allocation4 + $0x1c] sm:$0xf]
    %v239 = vld [vmem:[#allocation4 + $0x20] sm:$0xf]
    %v240 = vld [vmem:[#allocation4 + $0x24] sm:$0xf]
    %v241 = vld [vmem:[#allocation4 + $0x28] sm:$0xf]
    %v242 = vld [vmem:[#allocation4 + $0x2c] sm:$0xf]
    %v243 = vld [vmem:[#allocation4 + $0x30] sm:$0xf]
    %v244 = vld [vmem:[#allocation4 + $0x34] sm:$0xf]
    %v245 = vld [vmem:[#allocation4 + $0x38] sm:$0xf]
    %v246 = vld [vmem:[#allocation4 + $0x3c] sm:$0xf]
    %v247 = vld [vmem:[%s6] sm:$0x1]
    %v249 = vlaneseq
    %v250 = vshrl.u32 %v249, 7
    %v251 = vsub.s32 0, %v250
    %v252 = vrot.slane %v247, %v251
    %v270 = vunpack.c.l.b16 %v231
    %v271 = vunpack.c.l.b16 %v232
    %v272 = vunpack.c.l.b16 %v233
    %v273 = vunpack.c.l.b16 %v234
    %v274 = vunpack.c.l.b16 %v235
    %v275 = vunpack.c.l.b16 %v236
    %v276 = vunpack.c.l.b16 %v237
    %v277 = vunpack.c.l.b16 %v238
    %v278 = vunpack.c.l.b16 %v239
    %v279 = vunpack.c.l.b16 %v240
    %v280 = vunpack.c.l.b16 %v241
    %v281 = vunpack.c.l.b16 %v242
    %v282 = vunpack.c.l.b16 %v243
    %v283 = vunpack.c.l.b16 %v244
    %v284 = vunpack.c.l.b16 %v245
    %v285 = vunpack.c.l.b16 %v246
    %v286 = vpack.c.b16 %v271, %v270
    %v287 = vpack.c.b16 %v273, %v272
    %v288 = vpack.c.b16 %v275, %v274
    %v289 = vpack.c.b16 %v277, %v276
    %v290 = vpack.c.b16 %v279, %v278
    %v291 = vpack.c.b16 %v281, %v280
    %v292 = vpack.c.b16 %v283, %v282
    %v293 = vpack.c.b16 %v285, %v284
    %302 = vmatprep.subr.bf16.mxu0 0
    %303 = vmatpush1.bf16.msra.mxu0 %v293
    %304 = vmatprep.subr.bf16.mxu0 0
    %305 = vmatpush1.bf16.msra.mxu0 %v292
    %306 = vmatprep.subr.bf16.mxu0 0
    %307 = vmatpush1.bf16.msra.mxu0 %v291
    %308 = vmatprep.subr.bf16.mxu0 0
    %309 = vmatpush1.bf16.msra.mxu0 %v290
    %310 = vmatprep.subr.bf16.mxu0 0
    %311 = vmatpush1.bf16.msra.mxu0 %v289
    %312 = vmatprep.subr.bf16.mxu0 0
    %313 = vmatpush1.bf16.msra.mxu0 %v288
    %314 = vmatprep.subr.bf16.mxu0 0
    %315 = vmatpush1.bf16.msra.mxu0 %v287
    %316 = vmatprep.subr.bf16.mxu0 0
    %317 = vmatpush1.bf16.msra.mxu0 %v286
    %318 = vmatprep.subr.bf16.mxu0 0
    %319 = vmatpush2.bf16.msra.mxu0 0
    %320 = vmatprep.subr.bf16.mxu0 0
    %321 = vmatpush2.bf16.msra.mxu0 0
    %322 = vmatprep.subr.bf16.mxu0 0
    %323 = vmatpush2.bf16.msra.mxu0 0
    %324 = vmatprep.subr.bf16.mxu0 0
    %325 = vmatpush2.bf16.msra.mxu0 0
    %326 = vmatprep.subr.bf16.mxu0 0
    %327 = vmatpush2.bf16.msra.mxu0 0
    %328 = vmatprep.subr.bf16.mxu0 0
    %329 = vmatpush2.bf16.msra.mxu0 0
    %330 = vmatprep.subr.bf16.mxu0 0
    %331 = vmatpush2.bf16.msra.mxu0 0
    %332 = vmatprep.subr.bf16.mxu0 0
    %333 = vmatpush2.bf16.msra.mxu0 0
    %334 = vmatprep.mubr.bf16.mxu0 0
    %335 = vmatmul.mubr.bf16.gmra.mxu0 %v230
    %v336 = vpop.f32.mrf.mxu0
    %v337 = vadd.f32 %v252, %v336
    %v338 = vpop.f32.mrf.mxu0
    %v339 = vpop.f32.mrf.mxu0
    %v340 = vpop.f32.mrf.mxu0
    %341 = vdwg.mxu0
    %vm342 = vcmask 64512
    %343 = vst.msk [vmem:[%s7] sm:$0xff] %vm342, %v337
    // Predicated region
    $region38: #{forward.1} parent=1 // pred_check
      _
    $region39: #{forward.1} parent=1 // pred_check_branch
      %345 = sbr.rel (0) target = $region41
    $region40: #{forward.1} parent=1 // pred_region
      _
    $region41: #{forward.1} parent=1 // pred_fallthru
      _
    // Predicated region
    $region42: #{forward.1} parent=1 // pred_check
      _
    $region43: #{forward.1} parent=1 // pred_check_branch
      %347 = sbr.rel (0) target = $region45
    $region44: #{forward.1} parent=1 // pred_region
      _
    $region45: #{forward.1} parent=1 // pred_fallthru
      _
    %348 = vsyncpa [#allocation3], 1
    %349 = vsyncpa [#allocation5], 1

</llo_original>
